<compile_context>
chip_gen: v6e
topology: v6e:2x2x1
jax: 0.10.0
libtpu: 0.0.40
codegen_flags: <defaults>
</compile_context>

<pallas_src>
import jax
import jax.numpy as jnp
from jax.experimental import pallas as pl
from jax.experimental.pallas import tpu as pltpu


# ---------------- generation-aware VMEM budgeting ----------------

def _vmem_capacity_bytes():
    """Physical VMEM per TensorCore; conservative default if the query fails."""
    try:
        return int(pltpu.get_tpu_info().vmem_capacity_bytes)
    except Exception:
        return 64 * 1024 * 1024  # assume the smallest (v7x-class) part


def _budgets():
    cap = _vmem_capacity_bytes()
    if cap <= 80 * 1024 * 1024:
        # v7x-class: 64 MiB per TC -> modest blocks, tight limit.
        block_budget = 4 * 1024 * 1024
        default_limit = 40 * 1024 * 1024
    else:
        # v5e / v6e: 128 MiB -> larger blocks, fewer grid steps.
        block_budget = 12 * 1024 * 1024
        default_limit = 80 * 1024 * 1024
    return cap, block_budget, default_limit


def _sublane_multiple(dtype):
    return {4: 8, 2: 16, 1: 32}.get(jnp.dtype(dtype).itemsize, 8)


def _eff_itemsize(dtype):
    # Kernel upcasts to f32, so the per-element working set is >= 4 bytes
    # regardless of the I/O dtype.
    return max(4, jnp.dtype(dtype).itemsize)


def _round_up(x, m):
    return ((x + m - 1) // m) * m


def _vmem_limit_for(block_elems, dtype, cap, default_limit):
    itemsize = jnp.dtype(dtype).itemsize
    # 2 specs x 2 pipeline buffers at the I/O dtype + two live f32 intermediates
    # (upcast copy and exp) + slack for compiler-internal scratch.
    needed = block_elems * (2 * 2 * itemsize + 2 * 4) + (4 * 1024 * 1024)
    return int(min(max(default_limit, needed), int(cap * 0.9)))


# ---------------- tile choosers ----------------

def _choose_row_tile(rows, cols, dtype, block_budget):
    """Row tile for the last-axis path: byte-sized, sublane-aligned."""
    sub = _sublane_multiple(dtype)
    eff = _eff_itemsize(dtype)
    max_rows = max(1, block_budget // max(1, cols * eff))
    if max_rows >= rows:
        # Whole array fits in one block: split into 2 sublane-aligned tiles so a
        # 2-TC part (v7x) can shard the "parallel" grid axis, when there is work.
        if rows >= 2 * sub:
            return _round_up(pl.cdiv(rows, 2), sub)
        return rows
    tile = (max_rows // sub) * sub
    # Guard: for extreme cols even `sub` rows may exceed the budget; the vmem
    # limit below is raised to cover it.
    # TODO(synk): two-pass / online-softmax path for reduce dims too large for
    # a single VMEM block (e.g. 256K-wide vocab softmax).
    return max(sub, tile)


def _choose_sublane_tiles(outer, red, inner, dtype, block_budget):
    """(outer-fold, lane) tiles for the sublane-reduction path."""
    eff = _eff_itemsize(dtype)
    row_bytes = red * inner * eff
    if row_bytes <= block_budget:
        tile_c = inner
        tile_b = max(1, min(outer, block_budget // max(1, row_bytes)))
        if tile_b >= outer and outer >= 2:
            tile_b = pl.cdiv(outer, 2)  # keep >=2 grid steps for megacore
        return tile_b, tile_c
    # One (red, inner) slab is too big: keep a single outer element and tile
    # lanes in multiples of 128.
    max_cols = max(1, block_budget // max(1, red * eff))
    if max_cols >= inner:
        tile_c = inner
    else:
        tile_c = min(inner, max(128, (max_cols // 128) * 128))
    return 1, tile_c


# ---------------- last-axis (lane) softmax ----------------

def _softmax_lastdim_kernel(x_ref, o_ref):
    x = x_ref[...].astype(jnp.float32)
    m = jnp.max(x, axis=-1, keepdims=True)
    e = jnp.exp(x - m)
    s = jnp.sum(e, axis=-1, keepdims=True)
    inv = 1.0 / s  # exact per-row reciprocal (approx reciprocal broke sum-to-1)
    o_ref[...] = (e * inv).astype(o_ref.dtype)


def _softmax_lastdim_2d(x2d):
    rows, cols = x2d.shape
    cap, block_budget, default_limit = _budgets()
    tile_r = _choose_row_tile(rows, cols, x2d.dtype, block_budget)
    grid = (pl.cdiv(rows, tile_r),)
    vmem_limit = _vmem_limit_for(tile_r * cols, x2d.dtype, cap, default_limit)
    return pl.pallas_call(
        _softmax_lastdim_kernel,
        out_shape=jax.ShapeDtypeStruct((rows, cols), x2d.dtype),
        grid_spec=pltpu.PrefetchScalarGridSpec(
            num_scalar_prefetch=0,
            grid=grid,
            in_specs=[pl.BlockSpec((tile_r, cols), lambda i: (i, 0))],
            out_specs=pl.BlockSpec((tile_r, cols), lambda i: (i, 0)),
        ),
        compiler_params=pltpu.CompilerParams(
            dimension_semantics=("parallel",),
            vmem_limit_bytes=vmem_limit,
        ),
    )(x2d)


# ---------------- non-last axis (sublane) softmax: no HBM transpose ----------------

def _softmax_sublane_kernel(x_ref, o_ref):
    x = x_ref[...].astype(jnp.float32)  # (tile_b, red, tile_c)
    m = jnp.max(x, axis=-2, keepdims=True)
    e = jnp.exp(x - m)
    s = jnp.sum(e, axis=-2, keepdims=True)
    inv = 1.0 / s
    o_ref[...] = (e * inv).astype(o_ref.dtype)


def _softmax_sublane_3d(x3d):
    outer, red, inner = x3d.shape
    cap, block_budget, default_limit = _budgets()
    tile_b, tile_c = _choose_sublane_tiles(outer, red, inner, x3d.dtype, block_budget)
    grid = (pl.cdiv(outer, tile_b), pl.cdiv(inner, tile_c))
    vmem_limit = _vmem_limit_for(tile_b * red * tile_c, x3d.dtype, cap, default_limit)
    return pl.pallas_call(
        _softmax_sublane_kernel,
        out_shape=jax.ShapeDtypeStruct((outer, red, inner), x3d.dtype),
        grid_spec=pltpu.PrefetchScalarGridSpec(
            num_scalar_prefetch=0,
            grid=grid,
            in_specs=[pl.BlockSpec((tile_b, red, tile_c), lambda i, j: (i, 0, j))],
            out_specs=pl.BlockSpec((tile_b, red, tile_c), lambda i, j: (i, 0, j)),
        ),
        compiler_params=pltpu.CompilerParams(
            dimension_semantics=("parallel", "parallel"),
            vmem_limit_bytes=vmem_limit,
        ),
    )(x3d)


# ---------------- wrapper (torch.softmax(x, axis) semantics) ----------------

def softmax(x, axis):
    ndim = x.ndim
    axis = axis % ndim
    shape = x.shape

    if axis == ndim - 1:
        rows = 1
        for d in shape[:-1]:
            rows *= d
        cols = shape[-1]
        # TODO(synk): when cols is narrow (< 128 / not a multiple of 128), pack
        # several rows per 128-lane vreg row with a segmented (roll-butterfly)
        # max/sum so loads/stores and VPU/EUP work are lane-dense; omitted here
        # to keep lowering simple and safe.
        y2d = _softmax_lastdim_2d(x.reshape(rows, cols))
        return y2d.reshape(shape)

    # Any non-last axis: free reshape to (outer, reduce, inner); the reduce sits
    # on the sublane axis in-kernel, so no moveaxis / HBM transpose round-trip.
    outer = 1
    for d in shape[:axis]:
        outer *= d
    red = shape[axis]
    inner = 1
    for d in shape[axis + 1:]:
        inner *= d
    y3d = _softmax_sublane_3d(x.reshape(outer, red, inner))
    return y3d.reshape(shape)


if __name__ == "__main__":
    key = jax.random.PRNGKey(0)
    x = jax.random.normal(key, (1, 1, 64, 32), dtype=jnp.float32)

    # torch.softmax(x, -1): last-axis (lane) path.
    y = softmax(x, -1)
    jax.block_until_ready(y)
    ref = jax.nn.softmax(x, axis=-1)
    assert y.shape == x.shape and y.dtype == x.dtype
    assert jnp.allclose(y, ref, atol=1e-5, rtol=1e-5), "mismatch vs reference (axis=-1)"
    assert jnp.allclose(jnp.sum(y, axis=-1), 1.0, atol=1e-4), "rows do not sum to 1"

    # torch.softmax(x, 2): second-to-last axis exercises the sublane path
    # (no HBM transpose).
    y2 = softmax(x, 2)
    jax.block_until_ready(y2)
    ref2 = jax.nn.softmax(x, axis=2)
    assert jnp.allclose(y2, ref2, atol=1e-5, rtol=1e-5), "mismatch vs reference (axis=2)"
    assert jnp.allclose(jnp.sum(y2, axis=2), 1.0, atol=1e-4), "axis=2 slices do not sum to 1"

    # torch.softmax(x, 1): generic middle axis via the reshape -> sublane path.
    y3 = softmax(x, 1)
    jax.block_until_ready(y3)
    ref3 = jax.nn.softmax(x, axis=1)
    assert jnp.allclose(y3, ref3, atol=1e-5, rtol=1e-5), "mismatch vs reference (axis=1)"

    print("KERNEL_OK")
</pallas_src>

<mosaic_0001>
module attributes {stable_mosaic.version = 11 : i64} {
  func.func @_softmax_lastdim_kernel(%arg0: i32, %arg1: memref<32x32xf32, #tpu.memory_space<vmem>>, %arg2: memref<32x32xf32, #tpu.memory_space<vmem>>) attributes {dimension_semantics = [#tpu.dimension_semantics<parallel>], iteration_bounds = array<i64: 2>, scalar_prefetch = 0 : i64, scratch_operands = 0 : i64, tpu.core_type = #tpu.core_type<tc>, window_params = [{transform_indices = @transform_0, window_bounds = array<i64: 32, 32>}, {transform_indices = @transform_1, window_bounds = array<i64: 32, 32>}]} {
    %c0 = arith.constant 0 : index
    %c0_0 = arith.constant 0 : index
    %0 = vector.load %arg1[%c0, %c0_0] : memref<32x32xf32, #tpu.memory_space<vmem>>, vector<32x32xf32>
    %cst = arith.constant dense<0xFF800000> : vector<32xf32>
    %1 = vector.multi_reduction <maximumf>, %0, %cst [1] : vector<32x32xf32> to vector<32xf32>
    %2 = vector.shape_cast %1 : vector<32xf32> to vector<32x1xf32>
    %3 = vector.broadcast %2 : vector<32x1xf32> to vector<32x32xf32>
    %4 = arith.subf %0, %3 : vector<32x32xf32>
    %5 = math.exp %4 : vector<32x32xf32>
    %cst_1 = arith.constant dense<0.000000e+00> : vector<32xf32>
    %6 = vector.multi_reduction <add>, %5, %cst_1 [1] : vector<32x32xf32> to vector<32xf32>
    %7 = vector.shape_cast %6 : vector<32xf32> to vector<32x1xf32>
    %cst_2 = arith.constant 1.000000e+00 : f32
    %8 = vector.broadcast %cst_2 : f32 to vector<32x1xf32>
    %9 = arith.divf %8, %7 : vector<32x1xf32>
    %10 = vector.broadcast %9 : vector<32x1xf32> to vector<32x32xf32>
    %11 = arith.mulf %5, %10 : vector<32x32xf32>
    %c0_3 = arith.constant 0 : index
    %c0_4 = arith.constant 0 : index
    %12 = vector.load %arg2[%c0_3, %c0_4] : memref<32x32xf32, #tpu.memory_space<vmem>>, vector<32x32xf32>
    tpu.vector_store %arg2[%c0_3, %c0_4], %11 {strides = array<i32>} : memref<32x32xf32, #tpu.memory_space<vmem>>, vector<32x32xf32>,
    return
  }
  func.func @transform_0(%arg0: i32) -> (i32, i32) {
    %c0_i32 = arith.constant 0 : i32
    %c0_i32_0 = arith.constant 0 : i32
    return %arg0, %c0_i32 : i32, i32
  }
  func.func @transform_1(%arg0: i32) -> (i32, i32) {
    %c0_i32 = arith.constant 0 : i32
    %c0_i32_0 = arith.constant 0 : i32
    return %arg0, %c0_i32 : i32, i32
  }
}

</mosaic_0001>

<llo_original>
// kernel: tpu_custom_call.1
$region0: #{tpu_custom_call.1}
  #allocation0 [shape = 'u32[]', space=smem, size = 0x4, offset = 0x4, fixed_abs, tag = 'smem constant byte address 0x4 - core index']
  #allocation1 [shape = 'u32[144,128]{1,0:T(1,128)}', space=vmem, size = 0x12000, scoped, tag = 'internal scratch']
  %s0 = inlined_call_operand.vmem [shape: f32[64,32], index: 0, kind: input, shape index: {}]
  %s1 = inlined_call_operand.vmem [shape: f32[64,32], index: 1, kind: output, shape index: {}]
  %s2 = sld [smem:[#allocation0]]
  $region37: #{tpu_custom_call.1} parent=0
    _
  %s4 = ssub.s32 1, %s2
  %s5 = scalar_select 0, %s4, %s2
  loop: start=0, step=1, limit=4
  $region2: #{tpu_custom_call.1} parent=0 // loop_pre_header
    _
  $region3: #{tpu_custom_call.1} parent=0 // loop_header
    %s7 = sphi 0, %s11
    %p8 = scmp.ge.s32.totalorder %s7, 4
    %s17 = sphi 0, %s19
    %s20 = sphi 0, %s17
    %s21 = sphi 0, %s20
    %s37 = sphi 0, %s21
    %s43 = sphi 0, %s45
    %s46 = sphi 0, %s43
    %s47 = sphi 0, %s46
    %s63 = sphi 0, %s47
  $region4: #{tpu_custom_call.1} parent=0 // loop_header_branch
    %10 = sbr.rel (%p8) target = $region8
  $region5: #{tpu_custom_call.1} parent=0 // loop_body
    %s12 = ssub.s32 %s7, 1
    %s13 = ssub.s32 %s7, 2
    %s14 = sadd.s32 %s7, 1
    %s15 = ssub.s32 %s7, %s14
    %p16 = scmp.eq.s32.totalorder %s15, 0
    %s18 = sadd.s32 %s17, 1
    %s19 = scalar_select %p16, %s17, %s18
    %p22 = pneg %p16
    %p23 = scmp.eq.s32.totalorder %s7, 1
    %p24 = por %p22, %p23
    %p25 = scmp.ne.s32.totalorder %s17, %s20
    %p26 = scmp.eq.s32.totalorder %s7, 0
    %p27 = por %p25, %p26
    %p28 = scmp.ne.s32.totalorder %s17, %s20
    %p29 = scmp.eq.s32.totalorder %s12, 1
    %p30 = por %p28, %p29
    %p31 = scmp.ne.s32.totalorder %s20, %s21
    %p32 = scmp.eq.s32.totalorder %s12, 0
    %p33 = por %p31, %p32
    %p34 = scmp.ne.s32.totalorder %s20, %s21
    %p35 = scmp.eq.s32.totalorder %s13, 1
    %p36 = por %p34, %p35
    %p38 = scmp.ne.s32.totalorder %s21, %s37
    %p39 = scmp.eq.s32.totalorder %s13, 0
    %p40 = por %p38, %p39
    %s41 = ssub.s32 %s7, %s14
    %p42 = scmp.eq.s32.totalorder %s41, 0
    %s44 = sadd.s32 %s43, 1
    %s45 = scalar_select %p42, %s43, %s44
    %p48 = pneg %p42
    %p49 = scmp.eq.s32.totalorder %s7, 1
    %p50 = por %p48, %p49
    %p51 = scmp.ne.s32.totalorder %s43, %s46
    %p52 = scmp.eq.s32.totalorder %s7, 0
    %p53 = por %p51, %p52
    %p54 = scmp.ne.s32.totalorder %s43, %s46
    %p55 = scmp.eq.s32.totalorder %s12, 1
    %p56 = por %p54, %p55
    %p57 = scmp.ne.s32.totalorder %s46, %s47
    %p58 = scmp.eq.s32.totalorder %s12, 0
    %p59 = por %p57, %p58
    %p60 = scmp.ne.s32.totalorder %s46, %s47
    %p61 = scmp.eq.s32.totalorder %s13, 1
    %p62 = por %p60, %p61
    %p64 = scmp.ne.s32.totalorder %s47, %s63
    %p65 = scmp.eq.s32.totalorder %s13, 0
    %p66 = por %p64, %p65
    %p67 = scmp.le.s32.totalorder 1, %s7
    %p68 = scmp.lt.s32.totalorder %s7, 3
    %p69 = pnand %p67, %p68
    %p70 = pneg %p69
    // Predicated region
    $region9: #{tpu_custom_call.1} parent=5 // pred_check
      _
    $region10: #{tpu_custom_call.1} parent=5 // pred_check_branch
      %72 = sbr.rel (%p69) target = $region12
    $region11: #{tpu_custom_call.1} parent=5 // pred_region
      %s73 = ssub.s32 %s7, 1
    $region12: #{tpu_custom_call.1} parent=5 // pred_fallthru
      _
    %p74 = scmp.lt.s32.totalorder %s7, 2
    // Predicated region
    $region13: #{tpu_custom_call.1} parent=5 // pred_check
      %p75 = pneg %p74
    $region14: #{tpu_custom_call.1} parent=5 // pred_check_branch
      %77 = sbr.rel (%p75) target = $region16
    $region15: #{tpu_custom_call.1} parent=5 // pred_region
      // Predicated region
      $region17: #{tpu_custom_call.1} parent=15 // pred_check
        %p78 = pneg %p27
      $region18: #{tpu_custom_call.1} parent=15 // pred_check_branch
        %80 = sbr.rel (%p78) target = $region20
      $region19: #{tpu_custom_call.1} parent=15 // pred_region
        %s81 = smul.u32 4, %s7
        %p82 = scmp.lt.s32.totalorder %s81, 7
        %s83 = scalar_select %p82, %s81, 7
        %s84 = smul.addr %s83, 8
        %s85 = scalar_lea.vmem %s0, %s84
        %s86 = smul.u32 4, %s7
      $region20: #{tpu_custom_call.1} parent=15 // pred_fallthru
        _
    $region16: #{tpu_custom_call.1} parent=5 // pred_fallthru
      _
    %p87 = scmp.le.s32.totalorder 1, %s7
    %p88 = scmp.lt.s32.totalorder %s7, 3
    %p89 = pnand %p87, %p88
    %p90 = pneg %p89
    // Predicated region
    $region21: #{tpu_custom_call.1} parent=5 // pred_check
      _
    $region22: #{tpu_custom_call.1} parent=5 // pred_check_branch
      %92 = sbr.rel (%p89) target = $region24
    $region23: #{tpu_custom_call.1} parent=5 // pred_region
      %s93 = ssub.s32 %s7, 1
      %s94 = smul.u32 4, %s12
      %p95 = scmp.lt.s32.totalorder %s94, 7
      %s96 = scalar_select %p95, %s94, 7
      %s97 = smul.addr %s96, 8
      %s98 = scalar_lea.vmem %s0, %s97
      %p99 = pneg %p33
      %p100 = pneg %p30
      %p101 = pneg %p59
      %p102 = pneg %p56
      %s103 = smul.u32 4, %s12
      %p104 = scmp.lt.s32.totalorder %s103, 7
      %s105 = scalar_select %p104, %s103, 7
      %s106 = smul.addr %s105, 8
      %s107 = scalar_lea.vmem %s1, %s106
      %s108 = smul.u32 4, %s12
      %p109 = scmp.lt.s32.totalorder %s108, 7
      %s110 = scalar_select %p109, %s108, 7
      %s111 = smul.addr %s110, 8
      %s112 = scalar_lea.vmem %s0, %s111
      %s113 = smul.u32 4, %s12
      %s114 = smul.u32 4, %s12
      %p115 = scmp.lt.s32.totalorder %s114, 7
      %s116 = scalar_select %p115, %s114, 7
      %s117 = smul.addr %s116, 8
      %s118 = scalar_lea.vmem %s1, %s117
      %s119 = smul.u32 4, %s12
      %v120 = vld [vmem:[%s112] sm:$0xff]
      %v121 = vld [vmem:[%s112 + $0x8] sm:$0xff]
      %v122 = vld [vmem:[%s112 + $0x10] sm:$0xff]
      %v123 = vld [vmem:[%s112 + $0x18] sm:$0xff]
      %vm124 = vcmask 261120
      %v125 = vsel %vm124, %v120, -inf
      %126 = vmax.xlane.f32.xlu0 %v125
      %v127 = vpop.xlane.xlu0 %126
      %v128 = vsel %vm124, %v121, -inf
      %129 = vmax.xlane.f32.xlu0 %v128
      %v130 = vpop.xlane.xlu0 %129
      %v131 = vsel %vm124, %v122, -inf
      %132 = vmax.xlane.f32.xlu0 %v131
      %v133 = vpop.xlane.xlu0 %132
      %v134 = vsel %vm124, %v123, -inf
      %135 = vmax.xlane.f32.xlu0 %v134
      %v136 = vpop.xlane.xlu0 %135
      %v137 = vsub.f32 %v120, %v127
      %v138 = vsub.f32 %v121, %v130
      %v139 = vsub.f32 %v122, %v133
      %v140 = vsub.f32 %v123, %v136
      %v141 = vmul.f32 %v137, 1.442695
      %v142 = vpow.pop %v141
      %v143 = vmul.f32 %v138, 1.442695
      %v144 = vpow.pop %v143
      %v145 = vmul.f32 %v139, 1.442695
      %v146 = vpow.pop %v145
      %v147 = vmul.f32 %v140, 1.442695
      %v148 = vpow.pop %v147
      %v149 = vsel %vm124, %v142, 0.0
      %150 = vadd.xlane.f32.xlu0 %v149
      %v151 = vpop.xlane.xlu0 %150
      %v152 = vsel %vm124, %v144, 0.0
      %153 = vadd.xlane.f32.xlu0 %v152
      %v154 = vpop.xlane.xlu0 %153
      %v155 = vsel %vm124, %v146, 0.0
      %156 = vadd.xlane.f32.xlu0 %v155
      %v157 = vpop.xlane.xlu0 %156
      %v158 = vsel %vm124, %v148, 0.0
      %159 = vadd.xlane.f32.xlu0 %v158
      %v160 = vpop.xlane.xlu0 %159
      %v161 = vrcp.pop %v151
      %v162 = vmul.f32 1.0, %v161
      %v163 = vrcp.pop %v154
      %v164 = vmul.f32 1.0, %v163
      %v165 = vrcp.pop %v157
      %v166 = vmul.f32 1.0, %v165
      %v167 = vrcp.pop %v160
      %v168 = vmul.f32 1.0, %v167
      %v169 = vmul.f32 %v142, %v162
      %v170 = vmul.f32 %v144, %v164
      %v171 = vmul.f32 %v146, %v166
      %v172 = vmul.f32 %v148, %v168
      %173 = vst.msk [vmem:[%s118] sm:$0xff] %vm124, %v169
      %174 = vst.msk [vmem:[%s118 + $0x8] sm:$0xff] %vm124, %v170
      %175 = vst.msk [vmem:[%s118 + $0x10] sm:$0xff] %vm124, %v171
      %176 = vst.msk [vmem:[%s118 + $0x18] sm:$0xff] %vm124, %v172
      %s177 = smul.u32 4, %s12
      %p178 = scmp.lt.s32.totalorder %s177, 7
      %s179 = scalar_select %p178, %s177, 7
      %s180 = smul.addr %s179, 8
      %s181 = scalar_lea.vmem %s1, %s180
      // Predicated region
      $region25: #{tpu_custom_call.1} parent=23 // pred_check
        %p182 = pneg %p56
      $region26: #{tpu_custom_call.1} parent=23 // pred_check_branch
        %184 = sbr.rel (%p182) target = $region28
      $region27: #{tpu_custom_call.1} parent=23 // pred_region
        %s185 = smul.u32 4, %s12
      $region28: #{tpu_custom_call.1} parent=23 // pred_fallthru
        _
    $region24: #{tpu_custom_call.1} parent=5 // pred_fallthru
      _
    %p186 = scmp.le.s32.totalorder 2, %s7
    // Predicated region
    $region29: #{tpu_custom_call.1} parent=5 // pred_check
      %p187 = pneg %p186
    $region30: #{tpu_custom_call.1} parent=5 // pred_check_branch
      %189 = sbr.rel (%p187) target = $region32
    $region31: #{tpu_custom_call.1} parent=5 // pred_region
      %s190 = ssub.s32 %s7, 2
      // Predicated region
      $region33: #{tpu_custom_call.1} parent=31 // pred_check
        %p191 = pneg %p62
      $region34: #{tpu_custom_call.1} parent=31 // pred_check_branch
        %193 = sbr.rel (%p191) target = $region36
      $region35: #{tpu_custom_call.1} parent=31 // pred_region
        %s194 = smul.u32 4, %s13
        %p195 = scmp.lt.s32.totalorder %s194, 7
        %s196 = scalar_select %p195, %s194, 7
        %s197 = smul.addr %s196, 8
        %s198 = scalar_lea.vmem %s1, %s197
      $region36: #{tpu_custom_call.1} parent=31 // pred_fallthru
        _
    $region32: #{tpu_custom_call.1} parent=5 // pred_fallthru
      _
  $region6: #{tpu_custom_call.1} parent=0 // loop_footer
    %s11 = sadd.s32 1, %s7
  $region7: #{tpu_custom_call.1} parent=0 // loop_footer_branch
    %6 = sbr.rel target = $region3
  $region8: #{tpu_custom_call.1} parent=0 // loop_exit
    _

</llo_original>
